<compile_context>
chip_gen: v7x
topology: tpu7x:2x2x1
jax: 0.10.0
libtpu: 0.0.40
codegen_flags: <defaults>
</compile_context>

<pallas_src>
import functools

import jax
import jax.numpy as jnp
from jax.experimental import pallas as pl
from jax.experimental.pallas import tpu as pltpu


# Flip to True to single-buffer the VMEM-resident weight/bias (constant index_map) and
# reclaim one C x AA_pad buffer of VMEM on v7x. Kept off by default for compile safety.
_SINGLE_BUFFER_RESIDENT = False


def _round_up(x, m):
    return ((x + m - 1) // m) * m


def _sublane_multiple(dtype):
    # Min second-to-last tile dim: f32 -> 8, bf16 -> 16, int8/fp8 -> 32.
    return max(8, 32 // jnp.dtype(dtype).itemsize)


def prepare_atten_params(weight, bias, lane_multiple=128, param_dtype=jnp.bfloat16):
    """One-time parameter prep (do NOT call per forward).

    weight: (A*A, C) in torch.nn.Linear layout; bias: (A*A,).
    Returns:
      w_t_padded: (C, AA_pad) pre-transposed weight in `param_dtype` (bf16 by default so
                  the MXU runs at full bf16 rate), zero-padded to a lane-dense width.
      b_padded:   (1, AA_pad) bias kept in f32 (added after the f32 accumulation).
    """
    aa, c = weight.shape
    aa_pad = _round_up(aa, lane_multiple)
    w_t = (
        jnp.zeros((c, aa_pad), dtype=param_dtype)
        .at[:, :aa]
        .set(weight.T.astype(param_dtype))
    )
    b2 = (
        jnp.zeros((1, aa_pad), dtype=jnp.float32)
        .at[:, :aa]
        .set(bias.astype(jnp.float32)[None, :])
    )
    return w_t, b2


def _atten_kernel(x_ref, w_ref, b_ref, o_ref):
    # x_ref : (TM, C)        VMEM (one batch tile, input dtype)
    # w_ref : (C, AA_pad)    VMEM-resident weight (bf16)
    # b_ref : (1, AA_pad)    VMEM-resident bias (f32)
    # o_ref : (TM, AA_pad)   VMEM output tile
    x = x_ref[...].astype(w_ref.dtype)  # bf16 operands -> full-rate MXU (no-op if x is bf16)
    acc = jnp.dot(x, w_ref[...], preferred_element_type=jnp.float32)
    o_ref[...] = (acc + b_ref[...]).astype(o_ref.dtype)


def _resident_spec(block_shape):
    """BlockSpec for a grid-invariant (VMEM-resident) operand."""
    index_map = lambda i: (0, 0)
    if _SINGLE_BUFFER_RESIDENT:
        try:
            return pl.BlockSpec(block_shape, index_map, pipeline_mode=pl.Buffered(1))
        except (TypeError, AttributeError):
            pass
    return pl.BlockSpec(block_shape, index_map)


@functools.partial(jax.jit, static_argnames=("atten_size", "block_m", "return_padded"))
def atten_head_forward(x, w_t_padded, b_padded, *, atten_size, block_m=1024,
                       return_padded=False):
    """Forward pass of AttenHead.

    x           : (N, C) activations (f32 or bf16).
    w_t_padded  : (C, AA_pad) pre-transposed, lane-padded bf16 weight (prepare_atten_params).
    b_padded    : (1, AA_pad) lane-padded f32 bias.
    Returns (N, atten_size, atten_size) matching the PyTorch module, or the raw padded
    (N_pad, AA_pad) kernel output if return_padded=True (lets the consumer skip the
    post-kernel slice+reshape HBM copy).
    """
    n, c = x.shape
    aa = atten_size * atten_size
    c_w, aa_pad = w_t_padded.shape
    assert c_w == c
    assert aa_pad >= aa and aa_pad % 128 == 0
    assert b_padded.shape == (1, aa_pad)

    out_dtype = x.dtype

    # ---- Batch tiling: dtype-aware alignment, balanced tiles, >=2 grid steps ----
    sub = _sublane_multiple(x.dtype)
    align = 128 if n >= 128 else sub        # 128-aligned M tiles when N allows (MXU / vst hygiene)
    n_steps = max(1, -(-n // block_m))      # cdiv(n, block_m)
    if n >= 2 * align:
        n_steps = max(n_steps, 2)           # keep both v7x TensorCores busy
    tm = _round_up(-(-n // n_steps), align)

    # Clamp tm so the per-step working set fits the scoped-VMEM default (32 MiB) with margin.
    x_item = jnp.dtype(x.dtype).itemsize
    w_item = jnp.dtype(w_t_padded.dtype).itemsize
    o_item = jnp.dtype(out_dtype).itemsize
    w_bufs = 1 if _SINGLE_BUFFER_RESIDENT else 2

    def _vmem_bytes(tm_):
        return (2 * tm_ * c * x_item            # x tile, double-buffered
                + 2 * tm_ * aa_pad * o_item     # out tile, double-buffered
                + w_bufs * c * aa_pad * w_item  # resident weight
                + w_bufs * aa_pad * 4)          # resident bias

    vmem_budget = 28 * 1024 * 1024
    while tm > align and _vmem_bytes(tm) > vmem_budget:
        tm = _round_up(tm // 2, align)

    n_pad = _round_up(n, tm)
    x_p = x if n_pad == n else jnp.pad(x, ((0, n_pad - n), (0, 0)))
    grid = (n_pad // tm,)

    cost = pl.CostEstimate(
        flops=2 * n_pad * c * aa_pad,
        transcendentals=0,
        bytes_accessed=(n_pad * c * x_item
                        + c * aa_pad * w_item
                        + n_pad * aa_pad * o_item),
    )

    out_flat = pl.pallas_call(
        _atten_kernel,
        out_shape=jax.ShapeDtypeStruct((n_pad, aa_pad), out_dtype),
        grid_spec=pltpu.PrefetchScalarGridSpec(
            num_scalar_prefetch=0,
            grid=grid,
            in_specs=[
                pl.BlockSpec((tm, c), lambda i: (i, 0)),  # batch tile of x
                _resident_spec((c, aa_pad)),              # weight, VMEM-resident
                _resident_spec((1, aa_pad)),              # bias, VMEM-resident
            ],
            out_specs=pl.BlockSpec((tm, aa_pad), lambda i: (i, 0)),
        ),
        compiler_params=pltpu.CompilerParams(
            dimension_semantics=("parallel",),  # shard batch tiles across TCs on v7x
        ),
        cost_estimate=cost,
    )(x_p, w_t_padded, b_padded)

    if return_padded:
        # Lane/batch-padded result; slice [:N, :A*A] at the use site (fuses into the
        # consumer) instead of paying a separate slice+reshape HBM round trip here.
        return out_flat

    # Module semantics: (N, atten_size, atten_size).
    # TODO(synk): when the downstream consumer can read the padded (N_pad, AA_pad) buffer,
    # call with return_padded=True to eliminate this slice+reshape copy.
    return out_flat[:n, :aa].reshape(n, atten_size, atten_size)


if __name__ == "__main__":
    key = jax.random.PRNGKey(0)
    k_x, k_w = jax.random.split(key)

    # Small shapes consistent with the module (scaled down from in_channels=1024).
    batch = 64
    in_channels = 128
    atten_size = 14          # output features 196 -> padded to 256 lanes in the kernel

    x = jax.random.normal(k_x, (batch, in_channels), dtype=jnp.float32)

    # init_weights(): weight ~ N(0, 0.01), bias = 0 (torch Linear layout (A*A, C)).
    weight = 0.01 * jax.random.normal(
        k_w, (atten_size * atten_size, in_channels), dtype=jnp.float32
    )
    bias = jnp.zeros((atten_size * atten_size,), dtype=jnp.float32)

    # One-time parameter prep (transpose + lane pad + bf16 cast), outside the forward path.
    w_t_padded, b_padded = prepare_atten_params(weight, bias)

    # f32 activations path (default block_m; the balanced-tiling logic still yields a
    # 2-step grid here so the pipelined / multi-core path is exercised).
    out = atten_head_forward(x, w_t_padded, b_padded, atten_size=atten_size)
    out = jax.block_until_ready(out)

    ref = (x @ weight.T + bias).reshape(batch, atten_size, atten_size)
    assert out.shape == (batch, atten_size, atten_size)
    # bf16 MXU operands with f32 accumulation -> loose tolerance vs. the f32 reference.
    assert jnp.allclose(out, ref, atol=2e-2, rtol=2e-2), float(jnp.max(jnp.abs(out - ref)))

    # bf16 activations path (dtype-aware sublane alignment: 16 rows for bf16 tiles).
    x_bf16 = x.astype(jnp.bfloat16)
    out_bf16 = jax.block_until_ready(
        atten_head_forward(x_bf16, w_t_padded, b_padded, atten_size=atten_size)
    )
    assert out_bf16.shape == (batch, atten_size, atten_size)
    assert jnp.allclose(out_bf16.astype(jnp.float32), ref, atol=3e-2, rtol=3e-2)

    print("KERNEL_OK")
</pallas_src>

<mosaic_0001>
module attributes {stable_mosaic.version = 11 : i64} {
  func.func @_atten_kernel(%arg0: i32, %arg1: memref<32x128xf32, #tpu.memory_space<vmem>>, %arg2: memref<128x256xbf16, #tpu.memory_space<vmem>>, %arg3: memref<1x256xf32, #tpu.memory_space<vmem>>, %arg4: memref<32x256xf32, #tpu.memory_space<vmem>>) attributes {dimension_semantics = [#tpu.dimension_semantics<parallel>], iteration_bounds = array<i64: 2>, scalar_prefetch = 0 : i64, scratch_operands = 0 : i64, tpu.core_type = #tpu.core_type<tc>, window_params = [{transform_indices = @transform_0, window_bounds = array<i64: 32, 128>}, {pipeline_mode = #tpu.pipeline_mode<synchronous>, transform_indices = @transform_1, window_bounds = array<i64: 128, 256>}, {pipeline_mode = #tpu.pipeline_mode<synchronous>, transform_indices = @transform_2, window_bounds = array<i64: 1, 256>}, {transform_indices = @transform_3, window_bounds = array<i64: 32, 256>}]} {
    %c0 = arith.constant 0 : index
    %c0_0 = arith.constant 0 : index
    %0 = vector.load %arg1[%c0, %c0_0] : memref<32x128xf32, #tpu.memory_space<vmem>>, vector<32x128xf32>
    %1 = arith.truncf %0 : vector<32x128xf32> to vector<32x128xbf16>
    %c0_1 = arith.constant 0 : index
    %c0_2 = arith.constant 0 : index
    %2 = vector.load %arg2[%c0_1, %c0_2] : memref<128x256xbf16, #tpu.memory_space<vmem>>, vector<128x256xbf16>
    %cst = arith.constant dense<0.000000e+00> : vector<32x256xf32>
    %3 = tpu.matmul %1, %2, %cst {dimension_numbers = #tpu.dot_dimension_numbers<[1], [0], [0], [1], [0, 0, 1, 1], [], []>} : vector<32x128xbf16>, vector<128x256xbf16>, vector<32x256xf32> -> vector<32x256xf32>
    %c0_3 = arith.constant 0 : index
    %c0_4 = arith.constant 0 : index
    %4 = vector.load %arg3[%c0_3, %c0_4] : memref<1x256xf32, #tpu.memory_space<vmem>>, vector<1x256xf32>
    %5 = vector.broadcast %4 : vector<1x256xf32> to vector<32x256xf32>
    %6 = arith.addf %3, %5 : vector<32x256xf32>
    %c0_5 = arith.constant 0 : index
    %c0_6 = arith.constant 0 : index
    %7 = vector.load %arg4[%c0_5, %c0_6] : memref<32x256xf32, #tpu.memory_space<vmem>>, vector<32x256xf32>
    tpu.vector_store %arg4[%c0_5, %c0_6], %6 {strides = array<i32>} : memref<32x256xf32, #tpu.memory_space<vmem>>, vector<32x256xf32>,
    return
  }
  func.func @transform_0(%arg0: i32) -> (i32, i32) {
    %c0_i32 = arith.constant 0 : i32
    %c0_i32_0 = arith.constant 0 : i32
    return %arg0, %c0_i32 : i32, i32
  }
  func.func @transform_1(%arg0: i32) -> (i32, i32) {
    %c0_i32 = arith.constant 0 : i32
    %c0_i32_0 = arith.constant 0 : i32
    %c0_i32_1 = arith.constant 0 : i32
    return %c0_i32, %c0_i32_0 : i32, i32
  }
  func.func @transform_2(%arg0: i32) -> (i32, i32) {
    %c0_i32 = arith.constant 0 : i32
    %c0_i32_0 = arith.constant 0 : i32
    %c0_i32_1 = arith.constant 0 : i32
    return %c0_i32, %c0_i32_0 : i32, i32
  }
  func.func @transform_3(%arg0: i32) -> (i32, i32) {
    %c0_i32 = arith.constant 0 : i32
    %c0_i32_0 = arith.constant 0 : i32
    return %arg0, %c0_i32 : i32, i32
  }
}

</mosaic_0001>

<llo_original>
// kernel: atten_head_forward.1
$region0: #{atten_head_forward.1}
  #allocation0 [shape = 'u32[]', space=smem, size = 0x4, offset = 0x4, fixed_abs, tag = 'smem constant byte address 0x4 - core index']
  #allocation1 [shape = 'u32[144,128]{1,0:T(1,128)}', space=vmem, size = 0x12000, scoped, tag = 'internal scratch']
  %s0 = inlined_call_operand.hbm [shape: f32[64,128], index: 0, kind: input, shape index: {}]
  %s1 = inlined_call_operand.hbm [shape: bf16[128,256], index: 1, kind: input, shape index: {}]
  %s2 = inlined_call_operand.vmem [shape: f32[1,256], index: 2, kind: input, shape index: {}]
  %s3 = inlined_call_operand.vmem [shape: f32[64,256], index: 3, kind: output, shape index: {}]
  %s4 = sld [smem:[#allocation0]]
  $region53: #{atten_head_forward.1} parent=0
    _
  %s6 = ssub.s32 1, %s4
  %s7 = scalar_select 0, %s6, %s4
  $region1: #{atten_head_forward.1} parent=0
    #allocation2 [shape = 'u8[32768]{0}', space=vmem, size = 0x8000, scoped, tag = 'input window, operand 0']
    #allocation3 [shape = 's32[2]{0}', space=sflag, size = 0x8, scoped, tag = 'scoped memory for atten_head_forward.1']
    #allocation4 [shape = 'u8[65536]{0}', space=vmem, size = 0x10000, scoped, tag = 'input window, operand 1, single buffered']
    #allocation5 [shape = 's32[1]{0}', space=sflag, size = 0x4, scoped, tag = 'scoped memory for atten_head_forward.1']
    %8 = vsyncpa [#allocation3], 0
    %s9 = scalar_lea.sflag [#allocation3], 1
    %10 = vsyncpa %s9, 0
    %11 = vsyncpa [#allocation5], 0
    loop: start=0, step=1, limit=4
    $region2: #{atten_head_forward.1} parent=1 // loop_pre_header
      _
    $region3: #{atten_head_forward.1} parent=1 // loop_header
      %s13 = sphi 0, %s17
      %p14 = scmp.ge.s32.totalorder %s13, 4
      %s23 = sphi 0, %s25
      %s26 = sphi 0, %s23
      %s27 = sphi 0, %s26
      %s43 = sphi 0, %s27
      %s47 = sphi 0, %s47
      %s49 = sphi 0, %s47
      %s50 = sphi 0, %s49
      %s64 = sphi 0, %s50
      %s68 = sphi 0, %s68
      %s70 = sphi 0, %s68
      %s71 = sphi 0, %s70
      %s85 = sphi 0, %s71
      %s91 = sphi 0, %s93
      %s94 = sphi 0, %s91
      %s95 = sphi 0, %s94
      %s111 = sphi 0, %s95
    $region4: #{atten_head_forward.1} parent=1 // loop_header_branch
      %16 = sbr.rel (%p14) target = $region8
    $region5: #{atten_head_forward.1} parent=1 // loop_body
      %s18 = ssub.s32 %s13, 1
      %s19 = ssub.s32 %s13, 2
      %s20 = sadd.s32 %s13, 1
      %s21 = ssub.s32 %s13, %s20
      %p22 = scmp.eq.s32.totalorder %s21, 0
      %s24 = sadd.s32 %s23, 1
      %s25 = scalar_select %p22, %s23, %s24
      %p28 = pneg %p22
      %p29 = scmp.eq.s32.totalorder %s13, 1
      %p30 = por %p28, %p29
      %p31 = scmp.ne.s32.totalorder %s23, %s26
      %p32 = scmp.eq.s32.totalorder %s13, 0
      %p33 = por %p31, %p32
      %p34 = scmp.ne.s32.totalorder %s23, %s26
      %p35 = scmp.eq.s32.totalorder %s18, 1
      %p36 = por %p34, %p35
      %p37 = scmp.ne.s32.totalorder %s26, %s27
      %p38 = scmp.eq.s32.totalorder %s18, 0
      %p39 = por %p37, %p38
      %p40 = scmp.ne.s32.totalorder %s26, %s27
      %p41 = scmp.eq.s32.totalorder %s19, 1
      %p42 = por %p40, %p41
      %p44 = scmp.ne.s32.totalorder %s27, %s43
      %p45 = scmp.eq.s32.totalorder %s19, 0
      %p46 = por %p44, %p45
      %s48 = sadd.s32 %s47, 1
      %p51 = scmp.eq.s32.totalorder %s13, 1
      %p52 = scmp.ne.s32.totalorder %s47, %s49
      %p53 = scmp.eq.s32.totalorder %s13, 0
      %p54 = por %p52, %p53
      %p55 = scmp.ne.s32.totalorder %s47, %s49
      %p56 = scmp.eq.s32.totalorder %s18, 1
      %p57 = por %p55, %p56
      %p58 = scmp.ne.s32.totalorder %s49, %s50
      %p59 = scmp.eq.s32.totalorder %s18, 0
      %p60 = por %p58, %p59
      %p61 = scmp.ne.s32.totalorder %s49, %s50
      %p62 = scmp.eq.s32.totalorder %s19, 1
      %p63 = por %p61, %p62
      %p65 = scmp.ne.s32.totalorder %s50, %s64
      %p66 = scmp.eq.s32.totalorder %s19, 0
      %p67 = por %p65, %p66
      %s69 = sadd.s32 %s68, 1
      %p72 = scmp.eq.s32.totalorder %s13, 1
      %p73 = scmp.ne.s32.totalorder %s68, %s70
      %p74 = scmp.eq.s32.totalorder %s13, 0
      %p75 = por %p73, %p74
      %p76 = scmp.ne.s32.totalorder %s68, %s70
      %p77 = scmp.eq.s32.totalorder %s18, 1
      %p78 = por %p76, %p77
      %p79 = scmp.ne.s32.totalorder %s70, %s71
      %p80 = scmp.eq.s32.totalorder %s18, 0
      %p81 = por %p79, %p80
      %p82 = scmp.ne.s32.totalorder %s70, %s71
      %p83 = scmp.eq.s32.totalorder %s19, 1
      %p84 = por %p82, %p83
      %p86 = scmp.ne.s32.totalorder %s71, %s85
      %p87 = scmp.eq.s32.totalorder %s19, 0
      %p88 = por %p86, %p87
      %s89 = ssub.s32 %s13, %s20
      %p90 = scmp.eq.s32.totalorder %s89, 0
      %s92 = sadd.s32 %s91, 1
      %s93 = scalar_select %p90, %s91, %s92
      %p96 = pneg %p90
      %p97 = scmp.eq.s32.totalorder %s13, 1
      %p98 = por %p96, %p97
      %p99 = scmp.ne.s32.totalorder %s91, %s94
      %p100 = scmp.eq.s32.totalorder %s13, 0
      %p101 = por %p99, %p100
      %p102 = scmp.ne.s32.totalorder %s91, %s94
      %p103 = scmp.eq.s32.totalorder %s18, 1
      %p104 = por %p102, %p103
      %p105 = scmp.ne.s32.totalorder %s94, %s95
      %p106 = scmp.eq.s32.totalorder %s18, 0
      %p107 = por %p105, %p106
      %p108 = scmp.ne.s32.totalorder %s94, %s95
      %p109 = scmp.eq.s32.totalorder %s19, 1
      %p110 = por %p108, %p109
      %p112 = scmp.ne.s32.totalorder %s95, %s111
      %p113 = scmp.eq.s32.totalorder %s19, 0
      %p114 = por %p112, %p113
      %p115 = scmp.le.s32.totalorder 1, %s13
      %p116 = scmp.lt.s32.totalorder %s13, 3
      %p117 = pnand %p115, %p116
      %p118 = pneg %p117
      // Predicated region
      $region9: #{atten_head_forward.1} parent=5 // pred_check
        _
      $region10: #{atten_head_forward.1} parent=5 // pred_check_branch
        %120 = sbr.rel (%p117) target = $region12
      $region11: #{atten_head_forward.1} parent=5 // pred_region
        %s121 = ssub.s32 %s13, 1
        // Predicated region
        $region13: #{atten_head_forward.1} parent=11 // pred_check
          %p122 = pneg %p60
        $region14: #{atten_head_forward.1} parent=11 // pred_check_branch
          %124 = sbr.rel (%p122) target = $region16
        $region15: #{atten_head_forward.1} parent=11 // pred_region
          %s126 = ssub.s32 2048, 2048
          %127 = vsyncadd [#allocation5], %s126
          %s128 = sshll.u32 [#allocation4], 4
          %s129 = int_to_ptr.vmem [resolvable:$true] %s128
          %134 = dma.hbm_to_vmem [thread:$0]  %s1, 2048, %s129, [#allocation5], 128, 128, 8
        $region16: #{atten_head_forward.1} parent=11 // pred_fallthru
          _
        // Predicated region
        $region17: #{atten_head_forward.1} parent=11 // pred_check
          %p135 = pneg %p81
        $region18: #{atten_head_forward.1} parent=11 // pred_check_branch
          %137 = sbr.rel (%p135) target = $region20
        $region19: #{atten_head_forward.1} parent=11 // pred_region
          _
        $region20: #{atten_head_forward.1} parent=11 // pred_fallthru
          _
      $region12: #{atten_head_forward.1} parent=5 // pred_fallthru
        _
      %p138 = scmp.lt.s32.totalorder %s13, 2
      // Predicated region
      $region21: #{atten_head_forward.1} parent=5 // pred_check
        %p139 = pneg %p138
      $region22: #{atten_head_forward.1} parent=5 // pred_check_branch
        %141 = sbr.rel (%p139) target = $region24
      $region23: #{atten_head_forward.1} parent=5 // pred_region
        // Predicated region
        $region25: #{atten_head_forward.1} parent=23 // pred_check
          %p142 = pneg %p33
        $region26: #{atten_head_forward.1} parent=23 // pred_check_branch
          %144 = sbr.rel (%p142) target = $region28
        $region27: #{atten_head_forward.1} parent=23 // pred_region
          %s145 = sand.u32 %s23, 1
          %s146 = scalar_lea.sflag [#allocation3], %s145
          %s147 = sand.u32 %s23, 1
          %s148 = smul.addr %s147, 32
          %s149 = scalar_lea.vmem [#allocation2], %s148
          %s150 = smul.u32 4, %s13
          %s152 = ssub.s32 512, 512
          %153 = vsyncadd %s146, %s152
          %s154 = smul.addr %s150, 128
          %s155 = scalar_lea.hbm %s0, %s154
          %s156 = sshll.u32 %s149, 4
          %s157 = int_to_ptr.vmem [resolvable:$true] %s156
          %162 = dma.hbm_to_vmem [thread:$0]  %s155, 512, %s157, %s146, 128, 128, 8
        $region28: #{atten_head_forward.1} parent=23 // pred_fallthru
          _
      $region24: #{atten_head_forward.1} parent=5 // pred_fallthru
        _
      %p163 = scmp.le.s32.totalorder 1, %s13
      %p164 = scmp.lt.s32.totalorder %s13, 3
      %p165 = pnand %p163, %p164
      %p166 = pneg %p165
      // Predicated region
      $region29: #{atten_head_forward.1} parent=5 // pred_check
        _
      $region30: #{atten_head_forward.1} parent=5 // pred_check_branch
        %168 = sbr.rel (%p165) target = $region32
      $region31: #{atten_head_forward.1} parent=5 // pred_region
        %s169 = ssub.s32 %s13, 1
        %s170 = sand.u32 %s26, 1
        %s171 = scalar_lea.sflag [#allocation3], %s170
        %s172 = sand.u32 %s26, 1
        %s173 = smul.addr %s172, 32
        %s174 = scalar_lea.vmem [#allocation2], %s173
        // Predicated region
        $region33: #{atten_head_forward.1} parent=31 // pred_check
          %p175 = pneg %p39
        $region34: #{atten_head_forward.1} parent=31 // pred_check_branch
          %177 = sbr.rel (%p175) target = $region36
        $region35: #{atten_head_forward.1} parent=31 // pred_region
          %178 = dma.done %s171, 512
        $region36: #{atten_head_forward.1} parent=31 // pred_fallthru
          _
        // Predicated region
        $region37: #{atten_head_forward.1} parent=31 // pred_check
          %p179 = pneg %p60
        $region38: #{atten_head_forward.1} parent=31 // pred_check_branch
          %181 = sbr.rel (%p179) target = $region40
        $region39: #{atten_head_forward.1} parent=31 // pred_region
          %182 = dma.done [#allocation5], 2048
        $region40: #{atten_head_forward.1} parent=31 // pred_fallthru
          _
        %s183 = sand.u32 %s26, 1
        %s184 = scalar_lea.sflag [#allocation3], %s183
        %s185 = sand.u32 %s26, 1
        %s186 = smul.addr %s185, 32
        %s187 = scalar_lea.vmem [#allocation2], %s186
        %p188 = pneg %p39
        %p189 = pneg %p36
        %p190 = pneg %p60
        %p191 = pneg %p57
        %p192 = pneg %p81
        %p193 = pneg %p78
        %p194 = pneg %p107
        %p195 = pneg %p104
        %s196 = smul.u32 4, %s18
        %p197 = scmp.lt.s32.totalorder %s196, 7
        %s198 = scalar_select %p197, %s196, 7
        %s199 = smul.addr %s198, 2
        %s200 = smul.addr %s199, 8
        %s201 = scalar_lea.vmem %s3, %s200
        %s202 = smul.u32 4, %s18
        %s203 = smul.u32 4, %s18
        %p204 = scmp.lt.s32.totalorder %s203, 7
        %s205 = scalar_select %p204, %s203, 7
        %s206 = smul.addr %s205, 2
        %s207 = smul.addr %s206, 8
        %s208 = scalar_lea.vmem %s3, %s207
        %s209 = smul.u32 4, %s18
        %v211 = vld [vmem:[%s174] sm:$0xff]
        %v212 = vld [vmem:[%s174 + $0x8] sm:$0xff]
        %v213 = vld [vmem:[%s174 + $0x10] sm:$0xff]
        %v214 = vld [vmem:[%s174 + $0x18] sm:$0xff]
        %v215 = vpack.c.bf16 %v212, %v211
        %v216 = vpack.c.bf16 %v214, %v213
        %v217 = vld [vmem:[#allocation4] sm:$0xff]
        %v218 = vld [vmem:[#allocation4 + $0x8] sm:$0xff]
        %v219 = vld [vmem:[#allocation4 + $0x10] sm:$0xff]
        %v220 = vld [vmem:[#allocation4 + $0x18] sm:$0xff]
        %v221 = vld [vmem:[#allocation4 + $0x20] sm:$0xff]
        %v222 = vld [vmem:[#allocation4 + $0x28] sm:$0xff]
        %v223 = vld [vmem:[#allocation4 + $0x30] sm:$0xff]
        %v224 = vld [vmem:[#allocation4 + $0x38] sm:$0xff]
        %v225 = vld [vmem:[#allocation4 + $0x40] sm:$0xff]
        %v226 = vld [vmem:[#allocation4 + $0x48] sm:$0xff]
        %v227 = vld [vmem:[#allocation4 + $0x50] sm:$0xff]
        %v228 = vld [vmem:[#allocation4 + $0x58] sm:$0xff]
        %v229 = vld [vmem:[#allocation4 + $0x60] sm:$0xff]
        %v230 = vld [vmem:[#allocation4 + $0x68] sm:$0xff]
        %v231 = vld [vmem:[#allocation4 + $0x70] sm:$0xff]
        %v232 = vld [vmem:[#allocation4 + $0x78] sm:$0xff]
        %v233 = vld [vmem:[%s2] sm:$0x3]
        %v235 = vlaneseq
        %v236 = vshrl.u32 %v235, 7
        %v237 = vsub.s32 0, %v236
        %v238 = vrot.slane %v233, %v237
        %v239 = vlaneseq
        %v240 = vshrl.u32 %v239, 7
        %v241 = vsub.s32 1, %v240
        %v242 = vrot.slane %v233, %v241
        %v261 = vunpack.c.l.b16 %v217
        %v262 = vunpack.c.h.b16 %v217
        %v263 = vunpack.c.l.b16 %v218
        %v264 = vunpack.c.h.b16 %v218
        %v265 = vunpack.c.l.b16 %v219
        %v266 = vunpack.c.h.b16 %v219
        %v267 = vunpack.c.l.b16 %v220
        %v268 = vunpack.c.h.b16 %v220
        %v269 = vunpack.c.l.b16 %v221
        %v270 = vunpack.c.h.b16 %v221
        %v271 = vunpack.c.l.b16 %v222
        %v272 = vunpack.c.h.b16 %v222
        %v273 = vunpack.c.l.b16 %v223
        %v274 = vunpack.c.h.b16 %v223
        %v275 = vunpack.c.l.b16 %v224
        %v276 = vunpack.c.h.b16 %v224
        %v277 = vunpack.c.l.b16 %v225
        %v278 = vunpack.c.h.b16 %v225
        %v279 = vunpack.c.l.b16 %v226
        %v280 = vunpack.c.h.b16 %v226
        %v281 = vunpack.c.l.b16 %v227
        %v282 = vunpack.c.h.b16 %v227
        %v283 = vunpack.c.l.b16 %v228
        %v284 = vunpack.c.h.b16 %v228
        %v285 = vunpack.c.l.b16 %v229
        %v286 = vunpack.c.h.b16 %v229
        %v287 = vunpack.c.l.b16 %v230
        %v288 = vunpack.c.h.b16 %v230
        %v289 = vunpack.c.l.b16 %v231
        %v290 = vunpack.c.h.b16 %v231
        %v291 = vunpack.c.l.b16 %v232
        %v292 = vunpack.c.h.b16 %v232
        %v293 = vpack.c.b16 %v263, %v261
        %v294 = vpack.c.b16 %v264, %v262
        %v295 = vpack.c.b16 %v267, %v265
        %v296 = vpack.c.b16 %v268, %v266
        %v297 = vpack.c.b16 %v271, %v269
        %v298 = vpack.c.b16 %v272, %v270
        %v299 = vpack.c.b16 %v275, %v273
        %v300 = vpack.c.b16 %v276, %v274
        %v301 = vpack.c.b16 %v279, %v277
        %v302 = vpack.c.b16 %v280, %v278
        %v303 = vpack.c.b16 %v283, %v281
        %v304 = vpack.c.b16 %v284, %v282
        %v305 = vpack.c.b16 %v287, %v285
        %v306 = vpack.c.b16 %v288, %v286
        %v307 = vpack.c.b16 %v291, %v289
        %v308 = vpack.c.b16 %v292, %v290
        %325 = vmatprep.subr.bf16.mxu0 %v294
        %326 = vmatpush1.bf16.msra.mxu0 %v293
        %327 = vmatprep.subr.bf16.mxu0 %v296
        %328 = vmatpush1.bf16.msra.mxu0 %v295
        %329 = vmatprep.subr.bf16.mxu0 %v298
        %330 = vmatpush1.bf16.msra.mxu0 %v297
        %331 = vmatprep.subr.bf16.mxu0 %v300
        %332 = vmatpush1.bf16.msra.mxu0 %v299
        %333 = vmatprep.subr.bf16.mxu0 %v302
        %334 = vmatpush1.bf16.msra.mxu0 %v301
        %335 = vmatprep.subr.bf16.mxu0 %v304
        %336 = vmatpush1.bf16.msra.mxu0 %v303
        %337 = vmatprep.subr.bf16.mxu0 %v306
        %338 = vmatpush1.bf16.msra.mxu0 %v305
        %339 = vmatprep.subr.bf16.mxu0 %v308
        %340 = vmatpush1.bf16.msra.mxu0 %v307
        %341 = vmatprep.subr.bf16.mxu0 0
        %342 = vmatpush1.bf16.msra.mxu0 0
        %343 = vmatprep.subr.bf16.mxu0 0
        %344 = vmatpush1.bf16.msra.mxu0 0
        %345 = vmatprep.subr.bf16.mxu0 0
        %346 = vmatpush1.bf16.msra.mxu0 0
        %347 = vmatprep.subr.bf16.mxu0 0
        %348 = vmatpush1.bf16.msra.mxu0 0
        %349 = vmatprep.subr.bf16.mxu0 0
        %350 = vmatpush1.bf16.msra.mxu0 0
        %351 = vmatprep.subr.bf16.mxu0 0
        %352 = vmatpush1.bf16.msra.mxu0 0
        %353 = vmatprep.subr.bf16.mxu0 0
        %354 = vmatpush1.bf16.msra.mxu0 0
        %355 = vmatprep.subr.bf16.mxu0 0
        %356 = vmatpush1.bf16.msra.mxu0 0
        %357 = vmatprep.mubr.bf16.mxu0 0
        %358 = vmatmul.mubr.bf16.gmra.mrb[0].mxu0 %v215
        %v359 = vpop.f32.mrb[0].mxu0
        %v360 = vadd.f32 %v238, %v359
        %v361 = vpop.f32.mrb[0].mxu0
        %v362 = vadd.f32 %v242, %v361
        %v363 = vpop.f32.mrb[0].mxu0
        %v364 = vadd.f32 %v238, %v363
        %v365 = vpop.f32.mrb[0].mxu0
        %v366 = vadd.f32 %v242, %v365
        %367 = vmatprep.mubr.bf16.mxu0 0
        %368 = vmatmul.mubr.bf16.gmra.mrb[0].mxu0 %v216
        %v369 = vpop.f32.mrb[0].mxu0
        %v370 = vadd.f32 %v238, %v369
        %v371 = vpop.f32.mrb[0].mxu0
        %v372 = vadd.f32 %v242, %v371
        %v373 = vpop.f32.mrb[0].mxu0
        %v374 = vadd.f32 %v238, %v373
        %v375 = vpop.f32.mrb[0].mxu0
        %v376 = vadd.f32 %v242, %v375
        %377 = vdwg.mxu0
        %378 = vst [vmem:[%s208] sm:$0xff] %v360
        %379 = vst [vmem:[%s208 + $0x8] sm:$0xff] %v362
        %380 = vst [vmem:[%s208 + $0x10] sm:$0xff] %v364
        %381 = vst [vmem:[%s208 + $0x18] sm:$0xff] %v366
        %382 = vst [vmem:[%s208 + $0x20] sm:$0xff] %v370
        %383 = vst [vmem:[%s208 + $0x28] sm:$0xff] %v372
        %384 = vst [vmem:[%s208 + $0x30] sm:$0xff] %v374
        %385 = vst [vmem:[%s208 + $0x38] sm:$0xff] %v376
        %s386 = smul.u32 4, %s18
        %p387 = scmp.lt.s32.totalorder %s386, 7
        %s388 = scalar_select %p387, %s386, 7
        %s389 = smul.addr %s388, 2
        %s390 = smul.addr %s389, 8
        %s391 = scalar_lea.vmem %s3, %s390
        // Predicated region
        $region41: #{atten_head_forward.1} parent=31 // pred_check
          %p392 = pneg %p104
        $region42: #{atten_head_forward.1} parent=31 // pred_check_branch
          %394 = sbr.rel (%p392) target = $region44
        $region43: #{atten_head_forward.1} parent=31 // pred_region
          %s395 = smul.u32 4, %s18
        $region44: #{atten_head_forward.1} parent=31 // pred_fallthru
          _
      $region32: #{atten_head_forward.1} parent=5 // pred_fallthru
        _
      %p396 = scmp.le.s32.totalorder 2, %s13
      // Predicated region
      $region45: #{atten_head_forward.1} parent=5 // pred_check
        %p397 = pneg %p396
      $region46: #{atten_head_forward.1} parent=5 // pred_check_branch
        %399 = sbr.rel (%p397) target = $region48
      $region47: #{atten_head_forward.1} parent=5 // pred_region
        %s400 = ssub.s32 %s13, 2
        // Predicated region
        $region49: #{atten_head_forward.1} parent=47 // pred_check
          %p401 = pneg %p110
        $region50: #{atten_head_forward.1} parent=47 // pred_check_branch
          %403 = sbr.rel (%p401) target = $region52
        $region51: #{atten_head_forward.1} parent=47 // pred_region
          %s404 = smul.u32 4, %s19
          %p405 = scmp.lt.s32.totalorder %s404, 7
          %s406 = scalar_select %p405, %s404, 7
          %s407 = smul.addr %s406, 2
          %s408 = smul.addr %s407, 8
          %s409 = scalar_lea.vmem %s3, %s408
        $region52: #{atten_head_forward.1} parent=47 // pred_fallthru
          _
      $region48: #{atten_head_forward.1} parent=5 // pred_fallthru
        _
    $region6: #{atten_head_forward.1} parent=1 // loop_footer
      %s17 = sadd.s32 1, %s13
    $region7: #{atten_head_forward.1} parent=1 // loop_footer_branch
      %12 = sbr.rel target = $region3
    $region8: #{atten_head_forward.1} parent=1 // loop_exit
      _
    %410 = vsyncpa [#allocation3], 1
    %s411 = scalar_lea.sflag [#allocation3], 1
    %412 = vsyncpa %s411, 1
    %413 = vsyncpa [#allocation5], 1

</llo_original>
